<compile_context>
chip_gen: v7x
topology: tpu7x:2x2x1
jax: 0.10.0
libtpu: 0.0.40
codegen_flags: <defaults>
</compile_context>

<pallas_src>
import functools

import jax
import jax.numpy as jnp
from jax.experimental import pallas as pl
from jax.experimental.pallas import tpu as pltpu


def _round_up(x, m):
    return (x + m - 1) // m * m


# ---------------------------------------------------------------------------
# Fused kernel: hidden Linear+ReLU layers and the final Linear + log_softmax
# ---------------------------------------------------------------------------
def _fused_mlp_kernel(n_hidden, n_valid_out, x_ref, *refs):
    # refs = [w0, b0, w1, b1, ..., w_out, b_out, o_ref]
    *param_refs, o_ref = refs

    x = x_ref[...]                              # bf16 straight from HBM (no cast)

    for i in range(n_hidden):
        w = param_refs[2 * i][...]              # bf16 [h_in(_pad), h_out_pad]
        b = param_refs[2 * i + 1][...]          # f32  [1, h_out_pad]
        z = jnp.dot(x, w, preferred_element_type=jnp.float32) + b
        # ReLU in f32, cast back to bf16 for the next MXU pass.
        x = jnp.maximum(z, 0.0).astype(jnp.bfloat16)
        # dropout == identity in eval mode

    w_out = param_refs[-2][...]                 # bf16 [h_last_pad, out_pad] (zero-padded cols)
    b_out = param_refs[-1][...]                 # f32  [1, out_pad]; padded cols = -1e30
    z = jnp.dot(x, w_out, preferred_element_type=jnp.float32) + b_out

    # log_softmax; padded columns carry -1e30 bias (zero weights) -> exp() == 0,
    # so no explicit lane mask is needed.
    m = jnp.max(z, axis=1, keepdims=True)
    shifted = z - m
    lse = jnp.log(jnp.sum(jnp.exp(shifted), axis=1, keepdims=True))
    o_ref[...] = (shifted - lse)[:, :n_valid_out].astype(o_ref.dtype)


def fused_mlp_forward(x, hidden_params, out_w, out_b, output_size, *, tb=None):
    """Run the whole MLP in a single pallas_call.

    x:             [batch, input_size] (any float dtype; streamed as bf16)
    hidden_params: list of (w [h_in, h_out], b [1, h_out])
    out_w:         [h_last, output_size]
    out_b:         [1, output_size]
    """
    batch, in_dim = x.shape
    n_hidden = len(hidden_params)

    # ---- MXU/lane-friendly parameter padding (zero rows/cols = exact identity). ----
    # Note: the input feature dim is NOT padded -- x is the dominant HBM stream.
    padded_hidden = []
    prev = in_dim
    for w, b in hidden_params:
        h_in, h_out = w.shape
        h_out_p = _round_up(h_out, 128)
        w_p = jnp.zeros((prev, h_out_p), jnp.bfloat16).at[:h_in, :h_out].set(
            w.astype(jnp.bfloat16))
        b_p = jnp.zeros((1, h_out_p), jnp.float32).at[:, :h_out].set(
            b.astype(jnp.float32))
        padded_hidden.append((w_p, b_p))
        prev = h_out_p

    h_last = out_w.shape[0]
    out_pad = _round_up(max(output_size, 128), 128)
    w_out_p = jnp.zeros((prev, out_pad), jnp.bfloat16).at[:h_last, :output_size].set(
        out_w.astype(jnp.bfloat16))
    # Padded logit columns: huge negative bias (weights are zero) so they vanish
    # in the softmax -- replaces the in-kernel iota/where mask.
    b_out_p = jnp.full((1, out_pad), -1e30, jnp.float32).at[:, :output_size].set(
        out_b.astype(jnp.float32))

    params = [p for pair in padded_hidden for p in pair] + [w_out_p, b_out_p]

    # ---- Input stream in bf16: halves the dominant HBM read. ----
    x = x.astype(jnp.bfloat16)

    # ---- Batch tile: VMEM-budget derived, multiple of 16, >=2 steps when possible. ----
    weight_bytes = sum(int(p.size) * p.dtype.itemsize for p in params)
    act_cols = max([in_dim, out_pad] + [w.shape[1] for w, _ in padded_hidden])
    # double-buffered bf16 x tile + double-buffered (lane-padded) f32 out tile
    # + slack for intermediate activations.
    bytes_per_row = 2 * in_dim * 2 + 2 * out_pad * 4 + 4 * act_cols * 4
    b16 = _round_up(batch, 16)
    if tb is None:
        budget = 16 * 1024 * 1024              # conservative for v7x (64 MiB physical VMEM)
        avail = max(budget - weight_bytes, 1 << 20)
        tb = max(16, min(2048, (avail // bytes_per_row) // 16 * 16))
        if b16 >= 32:                          # v7x megacore: keep >= 2 grid steps
            tb = min(tb, _round_up((b16 + 1) // 2, 16))
        tb = min(tb, b16)

    padded_batch = _round_up(batch, tb)
    if padded_batch != batch:
        x = jnp.pad(x, ((0, padded_batch - batch), (0, 0)))
    grid = (padded_batch // tb,)

    # ---- Specs: activations tiled over batch, all weights fully resident. ----
    in_specs = [pl.BlockSpec((tb, in_dim), lambda i: (i, 0))]
    for p in params:
        in_specs.append(pl.BlockSpec(p.shape, lambda i: (0, 0)))

    kernel = functools.partial(_fused_mlp_kernel, n_hidden, output_size)

    vmem_bytes = int(min(64 << 20,
                         max(32 << 20, weight_bytes + tb * bytes_per_row + (4 << 20))))

    out = pl.pallas_call(
        kernel,
        out_shape=jax.ShapeDtypeStruct((padded_batch, output_size), jnp.float32),
        grid=grid,
        in_specs=in_specs,
        # Narrow f32 output block: last dim equals the full array dim, so it is a
        # legal block shape and the HBM writeback carries only useful bytes.
        out_specs=pl.BlockSpec((tb, output_size), lambda i: (i, 0)),
        compiler_params=pltpu.CompilerParams(
            dimension_semantics=("parallel",),
            vmem_limit_bytes=vmem_bytes,
        ),
    )(x, *params)

    return out[:batch]


# ---------------------------------------------------------------------------
# Module wrapper
# ---------------------------------------------------------------------------
class CustomClassifierPallas:
    """JAX/Pallas equivalent of the PyTorch CustomClassifier (eval mode)."""

    def __init__(self, input_size, output_size, hidden_layers, drop_p=0.5, key=None):
        if key is None:
            key = jax.random.PRNGKey(0)
        self.drop_p = drop_p  # unused (eval-mode dropout == identity)
        self.output_size = output_size

        sizes = [input_size] + list(hidden_layers)
        self.hidden_params = []
        for h_in, h_out in zip(sizes[:-1], sizes[1:]):
            key, kw, kb = jax.random.split(key, 3)
            bound = 1.0 / jnp.sqrt(h_in)
            w = jax.random.uniform(kw, (h_in, h_out), jnp.float32, -bound, bound)
            b = jax.random.uniform(kb, (1, h_out), jnp.float32, -bound, bound)
            # Weights stored as bf16 (MXU operand dtype); biases stay f32.
            self.hidden_params.append((w.astype(jnp.bfloat16), b))

        key, kw, kb = jax.random.split(key, 3)
        bound = 1.0 / jnp.sqrt(hidden_layers[-1])
        self.out_w = jax.random.uniform(
            kw, (hidden_layers[-1], output_size), jnp.float32, -bound, bound
        ).astype(jnp.bfloat16)
        self.out_b = jax.random.uniform(kb, (1, output_size), jnp.float32, -bound, bound)

    def __call__(self, x):
        return fused_mlp_forward(
            x, self.hidden_params, self.out_w, self.out_b, self.output_size
        )


# ---------------------------------------------------------------------------
# Reference (plain JAX, same bf16-matmul / f32-accumulate math) for sanity check
# ---------------------------------------------------------------------------
def _reference(model, x):
    h = x
    for w, b in model.hidden_params:
        z = jnp.dot(h.astype(jnp.bfloat16), w, preferred_element_type=jnp.float32) + b
        h = jnp.maximum(z, 0.0)
    z = (
        jnp.dot(h.astype(jnp.bfloat16), model.out_w, preferred_element_type=jnp.float32)
        + model.out_b
    )
    return jax.nn.log_softmax(z, axis=1)


if __name__ == "__main__":
    batch = 8
    input_size = 64
    hidden_layers = [128, 64]
    output_size = 10

    key = jax.random.PRNGKey(0)
    key, xkey, pkey = jax.random.split(key, 3)
    x = jax.random.normal(xkey, (batch, input_size), jnp.float32)

    model = CustomClassifierPallas(input_size, output_size, hidden_layers, drop_p=0.5, key=pkey)

    out = model(x)
    out = jax.block_until_ready(out)

    ref = _reference(model, x)
    assert out.shape == (batch, output_size)
    assert bool(jnp.all(jnp.isfinite(out))), "non-finite values in output"
    assert jnp.allclose(out, ref, atol=1e-4, rtol=1e-4), "mismatch vs reference"

    print("KERNEL_OK")
</pallas_src>

<mosaic_0001>
module attributes {stable_mosaic.version = 11 : i64} {
  func.func @_fused_mlp_kernel(%arg0: i32, %arg1: memref<16x64xbf16, #tpu.memory_space<vmem>>, %arg2: memref<64x128xbf16, #tpu.memory_space<vmem>>, %arg3: memref<1x128xf32, #tpu.memory_space<vmem>>, %arg4: memref<128x128xbf16, #tpu.memory_space<vmem>>, %arg5: memref<1x128xf32, #tpu.memory_space<vmem>>, %arg6: memref<128x128xbf16, #tpu.memory_space<vmem>>, %arg7: memref<1x128xf32, #tpu.memory_space<vmem>>, %arg8: memref<16x10xf32, #tpu.memory_space<vmem>>) attributes {dimension_semantics = [#tpu.dimension_semantics<parallel>], iteration_bounds = array<i64: 1>, scalar_prefetch = 0 : i64, scratch_operands = 0 : i64, tpu.core_type = #tpu.core_type<tc>, window_params = [{transform_indices = @transform_0, window_bounds = array<i64: 16, 64>}, {pipeline_mode = #tpu.pipeline_mode<synchronous>, transform_indices = @transform_1, window_bounds = array<i64: 64, 128>}, {pipeline_mode = #tpu.pipeline_mode<synchronous>, transform_indices = @transform_2, window_bounds = array<i64: 1, 128>}, {pipeline_mode = #tpu.pipeline_mode<synchronous>, transform_indices = @transform_3, window_bounds = array<i64: 128, 128>}, {pipeline_mode = #tpu.pipeline_mode<synchronous>, transform_indices = @transform_4, window_bounds = array<i64: 1, 128>}, {pipeline_mode = #tpu.pipeline_mode<synchronous>, transform_indices = @transform_5, window_bounds = array<i64: 128, 128>}, {pipeline_mode = #tpu.pipeline_mode<synchronous>, transform_indices = @transform_6, window_bounds = array<i64: 1, 128>}, {transform_indices = @transform_7, window_bounds = array<i64: 16, 10>}]} {
    %c0 = arith.constant 0 : index
    %c0_0 = arith.constant 0 : index
    %0 = vector.load %arg1[%c0, %c0_0] : memref<16x64xbf16, #tpu.memory_space<vmem>>, vector<16x64xbf16>
    %c0_1 = arith.constant 0 : index
    %c0_2 = arith.constant 0 : index
    %1 = vector.load %arg2[%c0_1, %c0_2] : memref<64x128xbf16, #tpu.memory_space<vmem>>, vector<64x128xbf16>
    %c0_3 = arith.constant 0 : index
    %c0_4 = arith.constant 0 : index
    %2 = vector.load %arg3[%c0_3, %c0_4] : memref<1x128xf32, #tpu.memory_space<vmem>>, vector<1x128xf32>
    %cst = arith.constant dense<0.000000e+00> : vector<16x128xf32>
    %3 = tpu.matmul %0, %1, %cst {dimension_numbers = #tpu.dot_dimension_numbers<[1], [0], [0], [1], [0, 0, 1, 1], [], []>} : vector<16x64xbf16>, vector<64x128xbf16>, vector<16x128xf32> -> vector<16x128xf32>
    %4 = vector.broadcast %2 : vector<1x128xf32> to vector<16x128xf32>
    %5 = arith.addf %3, %4 : vector<16x128xf32>
    %cst_5 = arith.constant 0.000000e+00 : f32
    %6 = vector.broadcast %cst_5 : f32 to vector<16x128xf32>
    %7 = arith.maximumf %5, %6 : vector<16x128xf32>
    %8 = arith.truncf %7 : vector<16x128xf32> to vector<16x128xbf16>
    %c0_6 = arith.constant 0 : index
    %c0_7 = arith.constant 0 : index
    %9 = vector.load %arg4[%c0_6, %c0_7] : memref<128x128xbf16, #tpu.memory_space<vmem>>, vector<128x128xbf16>
    %c0_8 = arith.constant 0 : index
    %c0_9 = arith.constant 0 : index
    %10 = vector.load %arg5[%c0_8, %c0_9] : memref<1x128xf32, #tpu.memory_space<vmem>>, vector<1x128xf32>
    %cst_10 = arith.constant dense<0.000000e+00> : vector<16x128xf32>
    %11 = tpu.matmul %8, %9, %cst_10 {dimension_numbers = #tpu.dot_dimension_numbers<[1], [0], [0], [1], [0, 0, 1, 1], [], []>} : vector<16x128xbf16>, vector<128x128xbf16>, vector<16x128xf32> -> vector<16x128xf32>
    %12 = vector.broadcast %10 : vector<1x128xf32> to vector<16x128xf32>
    %13 = arith.addf %11, %12 : vector<16x128xf32>
    %cst_11 = arith.constant 0.000000e+00 : f32
    %14 = vector.broadcast %cst_11 : f32 to vector<16x128xf32>
    %15 = arith.maximumf %13, %14 : vector<16x128xf32>
    %16 = arith.truncf %15 : vector<16x128xf32> to vector<16x128xbf16>
    %c0_12 = arith.constant 0 : index
    %c0_13 = arith.constant 0 : index
    %17 = vector.load %arg6[%c0_12, %c0_13] : memref<128x128xbf16, #tpu.memory_space<vmem>>, vector<128x128xbf16>
    %c0_14 = arith.constant 0 : index
    %c0_15 = arith.constant 0 : index
    %18 = vector.load %arg7[%c0_14, %c0_15] : memref<1x128xf32, #tpu.memory_space<vmem>>, vector<1x128xf32>
    %cst_16 = arith.constant dense<0.000000e+00> : vector<16x128xf32>
    %19 = tpu.matmul %16, %17, %cst_16 {dimension_numbers = #tpu.dot_dimension_numbers<[1], [0], [0], [1], [0, 0, 1, 1], [], []>} : vector<16x128xbf16>, vector<128x128xbf16>, vector<16x128xf32> -> vector<16x128xf32>
    %20 = vector.broadcast %18 : vector<1x128xf32> to vector<16x128xf32>
    %21 = arith.addf %19, %20 : vector<16x128xf32>
    %cst_17 = arith.constant dense<0xFF800000> : vector<16xf32>
    %22 = vector.multi_reduction <maximumf>, %21, %cst_17 [1] : vector<16x128xf32> to vector<16xf32>
    %23 = vector.shape_cast %22 : vector<16xf32> to vector<16x1xf32>
    %24 = vector.broadcast %23 : vector<16x1xf32> to vector<16x128xf32>
    %25 = arith.subf %21, %24 : vector<16x128xf32>
    %26 = math.exp %25 : vector<16x128xf32>
    %cst_18 = arith.constant dense<0.000000e+00> : vector<16xf32>
    %27 = vector.multi_reduction <add>, %26, %cst_18 [1] : vector<16x128xf32> to vector<16xf32>
    %28 = vector.shape_cast %27 : vector<16xf32> to vector<16x1xf32>
    %29 = math.log %28 : vector<16x1xf32>
    %30 = vector.broadcast %29 : vector<16x1xf32> to vector<16x128xf32>
    %31 = arith.subf %25, %30 : vector<16x128xf32>
    %32 = vector.extract_strided_slice %31 {offsets = [0, 0], sizes = [16, 10], strides = [1, 1]} : vector<16x128xf32> to vector<16x10xf32>
    %c0_19 = arith.constant 0 : index
    %c0_20 = arith.constant 0 : index
    %33 = vector.load %arg8[%c0_19, %c0_20] : memref<16x10xf32, #tpu.memory_space<vmem>>, vector<16x10xf32>
    tpu.vector_store %arg8[%c0_19, %c0_20], %32 {strides = array<i32>} : memref<16x10xf32, #tpu.memory_space<vmem>>, vector<16x10xf32>,
    return
  }
  func.func @transform_0(%arg0: i32) -> (i32, i32) {
    %c0_i32 = arith.constant 0 : i32
    %c0_i32_0 = arith.constant 0 : i32
    return %arg0, %c0_i32 : i32, i32
  }
  func.func @transform_1(%arg0: i32) -> (i32, i32) {
    %c0_i32 = arith.constant 0 : i32
    %c0_i32_0 = arith.constant 0 : i32
    %c0_i32_1 = arith.constant 0 : i32
    return %c0_i32, %c0_i32_0 : i32, i32
  }
  func.func @transform_2(%arg0: i32) -> (i32, i32) {
    %c0_i32 = arith.constant 0 : i32
    %c0_i32_0 = arith.constant 0 : i32
    %c0_i32_1 = arith.constant 0 : i32
    return %c0_i32, %c0_i32_0 : i32, i32
  }
  func.func @transform_3(%arg0: i32) -> (i32, i32) {
    %c0_i32 = arith.constant 0 : i32
    %c0_i32_0 = arith.constant 0 : i32
    %c0_i32_1 = arith.constant 0 : i32
    return %c0_i32, %c0_i32_0 : i32, i32
  }
  func.func @transform_4(%arg0: i32) -> (i32, i32) {
    %c0_i32 = arith.constant 0 : i32
    %c0_i32_0 = arith.constant 0 : i32
    %c0_i32_1 = arith.constant 0 : i32
    return %c0_i32, %c0_i32_0 : i32, i32
  }
  func.func @transform_5(%arg0: i32) -> (i32, i32) {
    %c0_i32 = arith.constant 0 : i32
    %c0_i32_0 = arith.constant 0 : i32
    %c0_i32_1 = arith.constant 0 : i32
    return %c0_i32, %c0_i32_0 : i32, i32
  }
  func.func @transform_6(%arg0: i32) -> (i32, i32) {
    %c0_i32 = arith.constant 0 : i32
    %c0_i32_0 = arith.constant 0 : i32
    %c0_i32_1 = arith.constant 0 : i32
    return %c0_i32, %c0_i32_0 : i32, i32
  }
  func.func @transform_7(%arg0: i32) -> (i32, i32) {
    %c0_i32 = arith.constant 0 : i32
    %c0_i32_0 = arith.constant 0 : i32
    return %arg0, %c0_i32 : i32, i32
  }
}

</mosaic_0001>

<llo_original>
// kernel: tpu_custom_call.1
$region0: #{tpu_custom_call.1}
  #allocation0 [shape = 'u32[]', space=smem, size = 0x4, offset = 0x4, fixed_abs, tag = 'smem constant byte address 0x4 - core index']
  #allocation1 [shape = 'u32[144,128]{1,0:T(1,128)}', space=vmem, size = 0x12000, scoped, tag = 'internal scratch']
  %s0 = inlined_call_operand.hbm [shape: bf16[16,64], index: 0, kind: input, shape index: {}]
  %s1 = inlined_call_operand.hbm [shape: bf16[64,128], index: 1, kind: input, shape index: {}]
  %s2 = inlined_call_operand.vmem [shape: f32[1,128], index: 2, kind: input, shape index: {}]
  %s3 = inlined_call_operand.hbm [shape: bf16[128,128], index: 3, kind: input, shape index: {}]
  %s4 = inlined_call_operand.vmem [shape: f32[1,128], index: 4, kind: input, shape index: {}]
  %s5 = inlined_call_operand.hbm [shape: bf16[128,128], index: 5, kind: input, shape index: {}]
  %s6 = inlined_call_operand.vmem [shape: f32[1,128], index: 6, kind: input, shape index: {}]
  %s7 = inlined_call_operand.hbm [shape: f32[16,10], index: 7, kind: output, shape index: {}]
  %s8 = sld [smem:[#allocation0]]
  $region54: #{tpu_custom_call.1} parent=0
    _
  %s10 = ssub.s32 1, %s8
  %s11 = scalar_select 0, %s10, %s8
  $region1: #{tpu_custom_call.1} parent=0
    #allocation2 [shape = 'u8[4096]{0}', space=vmem, size = 0x1000, scoped, tag = 'input window, operand 0, single buffered']
    #allocation3 [shape = 's32[1]{0}', space=sflag, size = 0x4, scoped, tag = 'scoped memory for tpu_custom_call.1']
    #allocation4 [shape = 's32[1]{0}', space=sflag, size = 0x4, scoped, tag = 'scoped memory for tpu_custom_call.1']
    #allocation5 [shape = 'u8[16384]{0}', space=vmem, size = 0x4000, scoped, tag = 'input window, operand 1, single buffered']
    #allocation6 [shape = 's32[1]{0}', space=sflag, size = 0x4, scoped, tag = 'scoped memory for tpu_custom_call.1']
    #allocation7 [shape = 'u8[32768]{0}', space=vmem, size = 0x8000, scoped, tag = 'input window, operand 3, single buffered']
    #allocation8 [shape = 'u8[32768]{0}', space=vmem, size = 0x8000, scoped, tag = 'input window, operand 5, single buffered']
    #allocation9 [shape = 's32[1]{0}', space=sflag, size = 0x4, scoped, tag = 'scoped memory for tpu_custom_call.1']
    #allocation10 [shape = 'u8[8192]{0}', space=vmem, size = 0x2000, scoped, tag = 'output window, operand 0, single buffered']
    %12 = vsyncpa [#allocation3], 0
    %13 = vsyncpa [#allocation6], 0
    %14 = vsyncpa [#allocation9], 0
    %15 = vsyncpa [#allocation4], 0
    // Predicated region
    $region2: #{tpu_custom_call.1} parent=1 // pred_check
      _
    $region3: #{tpu_custom_call.1} parent=1 // pred_check_branch
      %17 = sbr.rel (0) target = $region5
    $region4: #{tpu_custom_call.1} parent=1 // pred_region
      %s19 = ssub.s32 128, 128
      %20 = vsyncadd [#allocation3], %s19
      %s21 = sshll.u32 [#allocation2], 4
      %s22 = int_to_ptr.vmem [resolvable:$true] %s21
      %27 = dma.hbm_to_vmem [thread:$0]  %s0, 128, %s22, [#allocation3], 64, 64, 4
    $region5: #{tpu_custom_call.1} parent=1 // pred_fallthru
      _
    // Predicated region
    $region6: #{tpu_custom_call.1} parent=1 // pred_check
      _
    $region7: #{tpu_custom_call.1} parent=1 // pred_check_branch
      %29 = sbr.rel (0) target = $region9
    $region8: #{tpu_custom_call.1} parent=1 // pred_region
      %s31 = ssub.s32 512, 512
      %32 = vsyncadd [#allocation6], %s31
      %s33 = sshll.u32 [#allocation5], 4
      %s34 = int_to_ptr.vmem [resolvable:$true] %s33
      %39 = dma.hbm_to_vmem [thread:$0]  %s1, 512, %s34, [#allocation6], 64, 64, 4
    $region9: #{tpu_custom_call.1} parent=1 // pred_fallthru
      _
    // Predicated region
    $region10: #{tpu_custom_call.1} parent=1 // pred_check
      _
    $region11: #{tpu_custom_call.1} parent=1 // pred_check_branch
      %41 = sbr.rel (0) target = $region13
    $region12: #{tpu_custom_call.1} parent=1 // pred_region
      _
    $region13: #{tpu_custom_call.1} parent=1 // pred_fallthru
      _
    // Predicated region
    $region14: #{tpu_custom_call.1} parent=1 // pred_check
      _
    $region15: #{tpu_custom_call.1} parent=1 // pred_check_branch
      %43 = sbr.rel (0) target = $region17
    $region16: #{tpu_custom_call.1} parent=1 // pred_region
      %s45 = ssub.s32 1024, 1024
      %46 = vsyncadd [#allocation6], %s45
      %s47 = sshll.u32 [#allocation7], 4
      %s48 = int_to_ptr.vmem [resolvable:$true] %s47
      %53 = dma.hbm_to_vmem [thread:$0]  %s3, 1024, %s48, [#allocation6], 64, 64, 4
    $region17: #{tpu_custom_call.1} parent=1 // pred_fallthru
      _
    // Predicated region
    $region18: #{tpu_custom_call.1} parent=1 // pred_check
      _
    $region19: #{tpu_custom_call.1} parent=1 // pred_check_branch
      %55 = sbr.rel (0) target = $region21
    $region20: #{tpu_custom_call.1} parent=1 // pred_region
      _
    $region21: #{tpu_custom_call.1} parent=1 // pred_fallthru
      _
    // Predicated region
    $region22: #{tpu_custom_call.1} parent=1 // pred_check
      _
    $region23: #{tpu_custom_call.1} parent=1 // pred_check_branch
      %57 = sbr.rel (0) target = $region25
    $region24: #{tpu_custom_call.1} parent=1 // pred_region
      %s59 = ssub.s32 1024, 1024
      %60 = vsyncadd [#allocation9], %s59
      %s61 = sshll.u32 [#allocation8], 4
      %s62 = int_to_ptr.vmem [resolvable:$true] %s61
      %67 = dma.hbm_to_vmem [thread:$0]  %s5, 1024, %s62, [#allocation9], 64, 64, 4
    $region25: #{tpu_custom_call.1} parent=1 // pred_fallthru
      _
    // Predicated region
    $region26: #{tpu_custom_call.1} parent=1 // pred_check
      _
    $region27: #{tpu_custom_call.1} parent=1 // pred_check_branch
      %69 = sbr.rel (0) target = $region29
    $region28: #{tpu_custom_call.1} parent=1 // pred_region
      _
    $region29: #{tpu_custom_call.1} parent=1 // pred_fallthru
      _
    // Predicated region
    $region30: #{tpu_custom_call.1} parent=1 // pred_check
      _
    $region31: #{tpu_custom_call.1} parent=1 // pred_check_branch
      %71 = sbr.rel (0) target = $region33
    $region32: #{tpu_custom_call.1} parent=1 // pred_region
      %72 = dma.done [#allocation3], 128
    $region33: #{tpu_custom_call.1} parent=1 // pred_fallthru
      _
    // Predicated region
    $region34: #{tpu_custom_call.1} parent=1 // pred_check
      _
    $region35: #{tpu_custom_call.1} parent=1 // pred_check_branch
      %74 = sbr.rel (0) target = $region37
    $region36: #{tpu_custom_call.1} parent=1 // pred_region
      %75 = dma.done [#allocation6], 512
    $region37: #{tpu_custom_call.1} parent=1 // pred_fallthru
      _
    // Predicated region
    $region38: #{tpu_custom_call.1} parent=1 // pred_check
      _
    $region39: #{tpu_custom_call.1} parent=1 // pred_check_branch
      %77 = sbr.rel (0) target = $region41
    $region40: #{tpu_custom_call.1} parent=1 // pred_region
      %78 = dma.done [#allocation6], 1024
    $region41: #{tpu_custom_call.1} parent=1 // pred_fallthru
      _
    // Predicated region
    $region42: #{tpu_custom_call.1} parent=1 // pred_check
      _
    $region43: #{tpu_custom_call.1} parent=1 // pred_check_branch
      %80 = sbr.rel (0) target = $region45
    $region44: #{tpu_custom_call.1} parent=1 // pred_region
      %81 = dma.done [#allocation9], 1024
    $region45: #{tpu_custom_call.1} parent=1 // pred_fallthru
      _
    %v83 = vld [vmem:[#allocation2] sm:$0xf]
    %v84 = vld [vmem:[#allocation2 + $0x4] sm:$0xf]
    %v85 = vld [vmem:[#allocation5] sm:$0xf]
    %v86 = vld [vmem:[#allocation5 + $0x4] sm:$0xf]
    %v87 = vld [vmem:[#allocation5 + $0x8] sm:$0xf]
    %v88 = vld [vmem:[#allocation5 + $0xc] sm:$0xf]
    %v89 = vld [vmem:[#allocation5 + $0x10] sm:$0xf]
    %v90 = vld [vmem:[#allocation5 + $0x14] sm:$0xf]
    %v91 = vld [vmem:[#allocation5 + $0x18] sm:$0xf]
    %v92 = vld [vmem:[#allocation5 + $0x1c] sm:$0xf]
    %v93 = vld [vmem:[%s2] sm:$0x1]
    %v95 = vlaneseq
    %v96 = vshrl.u32 %v95, 7
    %v97 = vsub.s32 0, %v96
    %v98 = vrot.slane %v93, %v97
    %v102 = vunpack.c.l.b16 %v83
    %v103 = vunpack.c.l.b16 %v84
    %v104 = vpack.c.b16 %v103, %v102
    %v113 = vunpack.c.l.b16 %v85
    %v114 = vunpack.c.l.b16 %v86
    %v115 = vunpack.c.l.b16 %v87
    %v116 = vunpack.c.l.b16 %v88
    %v117 = vunpack.c.l.b16 %v89
    %v118 = vunpack.c.l.b16 %v90
    %v119 = vunpack.c.l.b16 %v91
    %v120 = vunpack.c.l.b16 %v92
    %v121 = vpack.c.b16 %v114, %v113
    %v122 = vpack.c.b16 %v116, %v115
    %v123 = vpack.c.b16 %v118, %v117
    %v124 = vpack.c.b16 %v120, %v119
    %vm129 = vcmask 523264
    %v131 = vsel %vm129, %v104, 0
    %133 = vmatprep.subr.bf16.mxu0 0
    %134 = vmatpush1.bf16.msra.mxu0 %v121
    %135 = vmatprep.subr.bf16.mxu0 0
    %136 = vmatpush1.bf16.msra.mxu0 %v122
    %137 = vmatprep.subr.bf16.mxu0 0
    %138 = vmatpush1.bf16.msra.mxu0 %v123
    %139 = vmatprep.subr.bf16.mxu0 0
    %140 = vmatpush1.bf16.msra.mxu0 %v124
    %141 = vmatprep.subr.bf16.mxu0 0
    %142 = vmatpush1.bf16.msra.mxu0 0
    %143 = vmatprep.subr.bf16.mxu0 0
    %144 = vmatpush1.bf16.msra.mxu0 0
    %145 = vmatprep.subr.bf16.mxu0 0
    %146 = vmatpush1.bf16.msra.mxu0 0
    %147 = vmatprep.subr.bf16.mxu0 0
    %148 = vmatpush1.bf16.msra.mxu0 0
    %149 = vmatprep.subr.bf16.mxu0 0
    %150 = vmatpush1.bf16.msra.mxu0 0
    %151 = vmatprep.subr.bf16.mxu0 0
    %152 = vmatpush1.bf16.msra.mxu0 0
    %153 = vmatprep.subr.bf16.mxu0 0
    %154 = vmatpush1.bf16.msra.mxu0 0
    %155 = vmatprep.subr.bf16.mxu0 0
    %156 = vmatpush1.bf16.msra.mxu0 0
    %157 = vmatprep.subr.bf16.mxu0 0
    %158 = vmatpush1.bf16.msra.mxu0 0
    %159 = vmatprep.subr.bf16.mxu0 0
    %160 = vmatpush1.bf16.msra.mxu0 0
    %161 = vmatprep.subr.bf16.mxu0 0
    %162 = vmatpush1.bf16.msra.mxu0 0
    %163 = vmatprep.subr.bf16.mxu0 0
    %164 = vmatpush1.bf16.msra.mxu0 0
    %165 = vmatprep.mubr.bf16.mxu0 0
    %166 = vmatmul.mubr.bf16.gmra.mrb[0].mxu0 %v131
    %v167 = vpop.f32.mrb[0].mxu0
    %v168 = vadd.f32 %v98, %v167
    %v169 = vpop.f32.mrb[0].mxu0
    %v170 = vpop.f32.mrb[0].mxu0
    %v171 = vadd.f32 %v98, %v170
    %v172 = vpop.f32.mrb[0].mxu0
    %173 = vdwg.mxu0
    %v174 = vmax.f32 %v168, 0.0
    %v175 = vmax.f32 %v171, 0.0
    %v176 = vpack.c.bf16 %v175, %v174
    %v177 = vld [vmem:[#allocation7] sm:$0xf]
    %v178 = vld [vmem:[#allocation7 + $0x4] sm:$0xf]
    %v179 = vld [vmem:[#allocation7 + $0x8] sm:$0xf]
    %v180 = vld [vmem:[#allocation7 + $0xc] sm:$0xf]
    %v181 = vld [vmem:[#allocation7 + $0x10] sm:$0xf]
    %v182 = vld [vmem:[#allocation7 + $0x14] sm:$0xf]
    %v183 = vld [vmem:[#allocation7 + $0x18] sm:$0xf]
    %v184 = vld [vmem:[#allocation7 + $0x1c] sm:$0xf]
    %v185 = vld [vmem:[#allocation7 + $0x20] sm:$0xf]
    %v186 = vld [vmem:[#allocation7 + $0x24] sm:$0xf]
    %v187 = vld [vmem:[#allocation7 + $0x28] sm:$0xf]
    %v188 = vld [vmem:[#allocation7 + $0x2c] sm:$0xf]
    %v189 = vld [vmem:[#allocation7 + $0x30] sm:$0xf]
    %v190 = vld [vmem:[#allocation7 + $0x34] sm:$0xf]
    %v191 = vld [vmem:[#allocation7 + $0x38] sm:$0xf]
    %v192 = vld [vmem:[#allocation7 + $0x3c] sm:$0xf]
    %v193 = vld [vmem:[%s4] sm:$0x1]
    %v195 = vlaneseq
    %v196 = vshrl.u32 %v195, 7
    %v197 = vsub.s32 0, %v196
    %v198 = vrot.slane %v193, %v197
    %v216 = vunpack.c.l.b16 %v177
    %v217 = vunpack.c.l.b16 %v178
    %v218 = vunpack.c.l.b16 %v179
    %v219 = vunpack.c.l.b16 %v180
    %v220 = vunpack.c.l.b16 %v181
    %v221 = vunpack.c.l.b16 %v182
    %v222 = vunpack.c.l.b16 %v183
    %v223 = vunpack.c.l.b16 %v184
    %v224 = vunpack.c.l.b16 %v185
    %v225 = vunpack.c.l.b16 %v186
    %v226 = vunpack.c.l.b16 %v187
    %v227 = vunpack.c.l.b16 %v188
    %v228 = vunpack.c.l.b16 %v189
    %v229 = vunpack.c.l.b16 %v190
    %v230 = vunpack.c.l.b16 %v191
    %v231 = vunpack.c.l.b16 %v192
    %v232 = vpack.c.b16 %v217, %v216
    %v233 = vpack.c.b16 %v219, %v218
    %v234 = vpack.c.b16 %v221, %v220
    %v235 = vpack.c.b16 %v223, %v222
    %v236 = vpack.c.b16 %v225, %v224
    %v237 = vpack.c.b16 %v227, %v226
    %v238 = vpack.c.b16 %v229, %v228
    %v239 = vpack.c.b16 %v231, %v230
    %248 = vmatprep.subr.bf16.mxu0 0
    %249 = vmatpush1.bf16.msra.mxu0 %v232
    %250 = vmatprep.subr.bf16.mxu0 0
    %251 = vmatpush1.bf16.msra.mxu0 %v233
    %252 = vmatprep.subr.bf16.mxu0 0
    %253 = vmatpush1.bf16.msra.mxu0 %v234
    %254 = vmatprep.subr.bf16.mxu0 0
    %255 = vmatpush1.bf16.msra.mxu0 %v235
    %256 = vmatprep.subr.bf16.mxu0 0
    %257 = vmatpush1.bf16.msra.mxu0 %v236
    %258 = vmatprep.subr.bf16.mxu0 0
    %259 = vmatpush1.bf16.msra.mxu0 %v237
    %260 = vmatprep.subr.bf16.mxu0 0
    %261 = vmatpush1.bf16.msra.mxu0 %v238
    %262 = vmatprep.subr.bf16.mxu0 0
    %263 = vmatpush1.bf16.msra.mxu0 %v239
    %264 = vmatprep.subr.bf16.mxu0 0
    %265 = vmatpush1.bf16.msra.mxu0 0
    %266 = vmatprep.subr.bf16.mxu0 0
    %267 = vmatpush1.bf16.msra.mxu0 0
    %268 = vmatprep.subr.bf16.mxu0 0
    %269 = vmatpush1.bf16.msra.mxu0 0
    %270 = vmatprep.subr.bf16.mxu0 0
    %271 = vmatpush1.bf16.msra.mxu0 0
    %272 = vmatprep.subr.bf16.mxu0 0
    %273 = vmatpush1.bf16.msra.mxu0 0
    %274 = vmatprep.subr.bf16.mxu0 0
    %275 = vmatpush1.bf16.msra.mxu0 0
    %276 = vmatprep.subr.bf16.mxu0 0
    %277 = vmatpush1.bf16.msra.mxu0 0
    %278 = vmatprep.subr.bf16.mxu0 0
    %279 = vmatpush1.bf16.msra.mxu0 0
    %280 = vmatprep.mubr.bf16.mxu0 0
    %281 = vmatmul.mubr.bf16.gmra.mrb[0].mxu0 %v176
    %v282 = vpop.f32.mrb[0].mxu0
    %v283 = vadd.f32 %v198, %v282
    %v284 = vpop.f32.mrb[0].mxu0
    %v285 = vpop.f32.mrb[0].mxu0
    %v286 = vadd.f32 %v198, %v285
    %v287 = vpop.f32.mrb[0].mxu0
    %288 = vdwg.mxu0
    %v289 = vmax.f32 %v283, 0.0
    %v290 = vmax.f32 %v286, 0.0
    %v291 = vpack.c.bf16 %v290, %v289
    %v292 = vld [vmem:[#allocation8] sm:$0xf]
    %v293 = vld [vmem:[#allocation8 + $0x4] sm:$0xf]
    %v294 = vld [vmem:[#allocation8 + $0x8] sm:$0xf]
    %v295 = vld [vmem:[#allocation8 + $0xc] sm:$0xf]
    %v296 = vld [vmem:[#allocation8 + $0x10] sm:$0xf]
    %v297 = vld [vmem:[#allocation8 + $0x14] sm:$0xf]
    %v298 = vld [vmem:[#allocation8 + $0x18] sm:$0xf]
    %v299 = vld [vmem:[#allocation8 + $0x1c] sm:$0xf]
    %v300 = vld [vmem:[#allocation8 + $0x20] sm:$0xf]
    %v301 = vld [vmem:[#allocation8 + $0x24] sm:$0xf]
    %v302 = vld [vmem:[#allocation8 + $0x28] sm:$0xf]
    %v303 = vld [vmem:[#allocation8 + $0x2c] sm:$0xf]
    %v304 = vld [vmem:[#allocation8 + $0x30] sm:$0xf]
    %v305 = vld [vmem:[#allocation8 + $0x34] sm:$0xf]
    %v306 = vld [vmem:[#allocation8 + $0x38] sm:$0xf]
    %v307 = vld [vmem:[#allocation8 + $0x3c] sm:$0xf]
    %v308 = vld [vmem:[%s6] sm:$0x1]
    %v310 = vlaneseq
    %v311 = vshrl.u32 %v310, 7
    %v312 = vsub.s32 0, %v311
    %v313 = vrot.slane %v308, %v312
    %v331 = vunpack.c.l.b16 %v292
    %v332 = vunpack.c.l.b16 %v293
    %v333 = vunpack.c.l.b16 %v294
    %v334 = vunpack.c.l.b16 %v295
    %v335 = vunpack.c.l.b16 %v296
    %v336 = vunpack.c.l.b16 %v297
    %v337 = vunpack.c.l.b16 %v298
    %v338 = vunpack.c.l.b16 %v299
    %v339 = vunpack.c.l.b16 %v300
    %v340 = vunpack.c.l.b16 %v301
    %v341 = vunpack.c.l.b16 %v302
    %v342 = vunpack.c.l.b16 %v303
    %v343 = vunpack.c.l.b16 %v304
    %v344 = vunpack.c.l.b16 %v305
    %v345 = vunpack.c.l.b16 %v306
    %v346 = vunpack.c.l.b16 %v307
    %v347 = vpack.c.b16 %v332, %v331
    %v348 = vpack.c.b16 %v334, %v333
    %v349 = vpack.c.b16 %v336, %v335
    %v350 = vpack.c.b16 %v338, %v337
    %v351 = vpack.c.b16 %v340, %v339
    %v352 = vpack.c.b16 %v342, %v341
    %v353 = vpack.c.b16 %v344, %v343
    %v354 = vpack.c.b16 %v346, %v345
    %363 = vmatprep.subr.bf16.mxu0 0
    %364 = vmatpush1.bf16.msra.mxu0 %v347
    %365 = vmatprep.subr.bf16.mxu0 0
    %366 = vmatpush1.bf16.msra.mxu0 %v348
    %367 = vmatprep.subr.bf16.mxu0 0
    %368 = vmatpush1.bf16.msra.mxu0 %v349
    %369 = vmatprep.subr.bf16.mxu0 0
    %370 = vmatpush1.bf16.msra.mxu0 %v350
    %371 = vmatprep.subr.bf16.mxu0 0
    %372 = vmatpush1.bf16.msra.mxu0 %v351
    %373 = vmatprep.subr.bf16.mxu0 0
    %374 = vmatpush1.bf16.msra.mxu0 %v352
    %375 = vmatprep.subr.bf16.mxu0 0
    %376 = vmatpush1.bf16.msra.mxu0 %v353
    %377 = vmatprep.subr.bf16.mxu0 0
    %378 = vmatpush1.bf16.msra.mxu0 %v354
    %379 = vmatprep.subr.bf16.mxu0 0
    %380 = vmatpush1.bf16.msra.mxu0 0
    %381 = vmatprep.subr.bf16.mxu0 0
    %382 = vmatpush1.bf16.msra.mxu0 0
    %383 = vmatprep.subr.bf16.mxu0 0
    %384 = vmatpush1.bf16.msra.mxu0 0
    %385 = vmatprep.subr.bf16.mxu0 0
    %386 = vmatpush1.bf16.msra.mxu0 0
    %387 = vmatprep.subr.bf16.mxu0 0
    %388 = vmatpush1.bf16.msra.mxu0 0
    %389 = vmatprep.subr.bf16.mxu0 0
    %390 = vmatpush1.bf16.msra.mxu0 0
    %391 = vmatprep.subr.bf16.mxu0 0
    %392 = vmatpush1.bf16.msra.mxu0 0
    %393 = vmatprep.subr.bf16.mxu0 0
    %394 = vmatpush1.bf16.msra.mxu0 0
    %395 = vmatprep.mubr.bf16.mxu0 0
    %396 = vmatmul.mubr.bf16.gmra.mrb[0].mxu0 %v291
    %v397 = vpop.f32.mrb[0].mxu0
    %v398 = vadd.f32 %v313, %v397
    %v399 = vpop.f32.mrb[0].mxu0
    %v400 = vpop.f32.mrb[0].mxu0
    %v401 = vadd.f32 %v313, %v400
    %v402 = vpop.f32.mrb[0].mxu0
    %403 = vdwg.mxu0
    %404 = vmax.xlane.f32.xlu0 %v398
    %v405 = vpop.xlane.xlu0 %404
    %406 = vmax.xlane.f32.xlu0 %v401
    %v407 = vpop.xlane.xlu0 %406
    %v408 = vsub.f32 %v398, %v405
    %v409 = vsub.f32 %v401, %v407
    %v410 = vmul.f32 %v408, 1.442695
    %v411 = vpow.pop %v410
    %v412 = vmul.f32 %v409, 1.442695
    %v413 = vpow.pop %v412
    %414 = vadd.xlane.f32.xlu0 %v411
    %v415 = vpop.xlane.xlu0 %414
    %416 = vadd.xlane.f32.xlu0 %v413
    %v417 = vpop.xlane.xlu0 %416
    %v418 = vlog2.pop %v415
    %v419 = vmul.f32 %v418, 0.6931472
    %v420 = vlog2.pop %v417
    %v421 = vmul.f32 %v420, 0.6931472
    %v422 = vsub.f32 %v408, %v419
    %v423 = vsub.f32 %v409, %v421
    %vm424 = vcmask 80896
    %425 = vst.msk [vmem:[#allocation10] sm:$0xff] %vm424, %v422
    %426 = vst.msk [vmem:[#allocation10 + $0x8] sm:$0xff] %vm424, %v423
    // Predicated region
    $region46: #{tpu_custom_call.1} parent=1 // pred_check
      _
    $region47: #{tpu_custom_call.1} parent=1 // pred_check_branch
      %428 = sbr.rel (0) target = $region49
    $region48: #{tpu_custom_call.1} parent=1 // pred_region
      %s430 = ssub.s32 256, 256
      %431 = vsyncadd [#allocation4], %s430
      %s432 = sshll.u32 [#allocation10], 4
      %s433 = int_to_ptr.vmem [resolvable:$true] %s432
      %438 = dma.vmem_to_hbm [thread:$0]  %s433, 256, %s7, [#allocation4], 128, 128, 8
    $region49: #{tpu_custom_call.1} parent=1 // pred_fallthru
      _
    // Predicated region
    $region50: #{tpu_custom_call.1} parent=1 // pred_check
      _
    $region51: #{tpu_custom_call.1} parent=1 // pred_check_branch
      %440 = sbr.rel (0) target = $region53
    $region52: #{tpu_custom_call.1} parent=1 // pred_region
      %441 = dma.done [#allocation4], 256
    $region53: #{tpu_custom_call.1} parent=1 // pred_fallthru
      _
    %442 = vsyncpa [#allocation3], 1
    %443 = vsyncpa [#allocation6], 1
    %444 = vsyncpa [#allocation9], 1
    %445 = vsyncpa [#allocation4], 1

</llo_original>
